<compile_context>
chip_gen: v5e
topology: v5e:2x2
jax: 0.10.0
libtpu: 0.0.40
codegen_flags: <defaults>
</compile_context>

<pallas_src>
import functools
import math

import jax
import jax.numpy as jnp
from jax import lax
from jax.experimental import pallas as pl
from jax.experimental.pallas import tpu as pltpu

LN_EPS = 1e-5  # nn.LayerNorm default


# ----------------------------- Pallas kernel --------------------------------
def _patch_embed_kernel(x_ref, w_ref, par_ref, p_ref, o_ref, *, pack):
    # x_ref:   (tmp, PK)  bf16  packed patches (`pack` tokens per physical row)
    # w_ref:   (PK, PE)   bf16  block-diagonal projection weight
    # par_ref: (8, PE)    f32   row0 = conv bias, row1 = LN gamma, row2 = LN beta
    # p_ref:   (PE, PE)   bf16  block-diag group-averaging matrix (1/E per group)
    # o_ref:   (tmp, PE)  f32
    y = jnp.dot(x_ref[...], w_ref[...], preferred_element_type=jnp.float32)
    y = y + par_ref[0:1, :]                                  # conv bias

    if pack > 1:
        # Per-token mean / E[y^2] over each token's own E-lane group, done
        # lane-dense on the MXU with explicit bf16 operands (1/E is exact in
        # bf16).  Both matmuls depend only on y -> no mean->center->var chain.
        yb = y.astype(jnp.bfloat16)
        s1 = jnp.dot(yb, p_ref[...], preferred_element_type=jnp.float32)
        s2 = jnp.dot(yb * yb, p_ref[...], preferred_element_type=jnp.float32)
    else:
        # pack == 1: the whole 1-token row is one group -> plain lane reduce.
        s1 = jnp.mean(y, axis=-1, keepdims=True)
        s2 = jnp.mean(y * y, axis=-1, keepdims=True)

    inv = lax.rsqrt(jnp.maximum(s2 - s1 * s1, 0.0) + LN_EPS)
    o_ref[...] = ((y - s1) * (inv * par_ref[1:2, :]) + par_ref[2:3, :]).astype(
        o_ref.dtype)


def _fused_proj_layernorm(patches_packed, w_bd, params, p_mat, *, tmp, pack,
                          vmem_limit_bytes):
    """patches_packed: (MP, PK) bf16, w_bd: (PK, PE) bf16 -> (MP, PE) f32."""
    MP, PK = patches_packed.shape
    PE = w_bd.shape[1]
    grid = (pl.cdiv(MP, tmp),)   # ragged last block: OOB writes are masked

    return pl.pallas_call(
        functools.partial(_patch_embed_kernel, pack=pack),
        out_shape=jax.ShapeDtypeStruct((MP, PE), jnp.float32),
        grid_spec=pltpu.PrefetchScalarGridSpec(
            num_scalar_prefetch=0,
            grid=grid,
            in_specs=[
                pl.BlockSpec((tmp, PK), lambda i: (i, 0)),   # streamed LHS
                pl.BlockSpec((PK, PE), lambda i: (0, 0)),    # weight (resident)
                pl.BlockSpec((8, PE), lambda i: (0, 0)),     # bias/gamma/beta
                pl.BlockSpec((PE, PE), lambda i: (0, 0)),    # group-avg matrix
            ],
            out_specs=pl.BlockSpec((tmp, PE), lambda i: (i, 0)),
        ),
        compiler_params=pltpu.CompilerParams(
            dimension_semantics=("parallel",),
            vmem_limit_bytes=vmem_limit_bytes,
        ),
    )(patches_packed, w_bd, params, p_mat)


# ------------------------------ JAX glue -------------------------------------
@functools.partial(jax.jit, static_argnames=("patch_size", "stride"))
def overlap_patch_embed(x, conv_w, conv_b, ln_w, ln_b, *, patch_size, stride):
    """x: (B, C, H, W, D). Returns (tokens (B, L, E) f32, H_out, W_out, D_out)."""
    B, C = x.shape[0], x.shape[1]
    E = conv_w.shape[0]
    k, s, p = patch_size, stride, patch_size // 2
    K = C * k * k * k

    # im2col straight into channels-last (B, Ho, Wo, Do, K), bf16.  The K
    # feature order emitted by conv_general_dilated_patches is channel-major
    # (c, k1, k2, k3), matching conv_w.reshape(E, K); this ordering is
    # verified numerically against the f32 conv reference in __main__.
    # (bf16 operands here -> training-style precision, f32 accumulation.)
    pat = lax.conv_general_dilated_patches(
        x.astype(jnp.bfloat16),
        filter_shape=(k, k, k),
        window_strides=(s, s, s),
        padding=[(p, p)] * 3,
        dimension_numbers=("NCDHW", "OIDHW", "NDHWC"))
    Ho, Wo, Do = pat.shape[1], pat.shape[2], pat.shape[3]
    L = Ho * Wo * Do
    M = B * L

    # Lane-dense packing: `pack` tokens per physical 128-lane row.  pack is a
    # divisor of M so the packing reshape below is a free row-major collapse
    # (no jnp.pad copy in the wrapper).
    if E < 128 and 128 % E == 0:
        pack = math.gcd(128 // E, M)
    else:
        pack = 1
    PK, PE = pack * K, pack * E
    MP = M // pack

    # Row tile: as large as useful (amortize ~0.35us/step grid overhead) but
    # capped so the "parallel" grid keeps >= 2 steps for v7x's 2 TensorCores.
    if MP <= 8:
        tmp = MP                                   # full-dim block (legal)
    else:
        tmp = min(512, -(-((MP + 1) // 2) // 8) * 8)   # mult of 8, >= 2 steps

    patches_packed = pat.reshape(MP, PK)           # free row-major reshape

    # Tiny per-call parameter prep.
    w_mat = conv_w.reshape(E, K).T.astype(jnp.float32)                    # (K, E)
    w_bd = jnp.kron(jnp.eye(pack, dtype=jnp.float32), w_mat).astype(jnp.bfloat16)
    params = jnp.zeros((8, PE), dtype=jnp.float32)
    params = params.at[0].set(jnp.tile(conv_b.astype(jnp.float32), pack))
    params = params.at[1].set(jnp.tile(ln_w.astype(jnp.float32), pack))
    params = params.at[2].set(jnp.tile(ln_b.astype(jnp.float32), pack))
    p_mat = jnp.kron(jnp.eye(pack, dtype=jnp.float32),
                     jnp.full((E, E), 1.0 / E, dtype=jnp.float32)
                     ).astype(jnp.bfloat16)                               # (PE, PE)

    # VMEM budget: double-buffered streamed LHS + output tiles, resident
    # constants (x2 safety), plus headroom; clamp to v7x's 64 MiB physical.
    vmem = 2 * (tmp * PK * 2 + tmp * PE * 4) \
        + 2 * (PK * PE * 2 + PE * PE * 2 + 8 * PE * 4) + (2 << 20)
    vmem = int(min(max(vmem, 4 << 20), 64 << 20))

    out = _fused_proj_layernorm(patches_packed, w_bd, params, p_mat,
                                tmp=tmp, pack=pack, vmem_limit_bytes=vmem)

    # (MP, PE) row-major == (M, E) row-major: free reshape, no slice copy.
    tokens = out.reshape(B, L, E)
    return tokens, Ho, Wo, Do


# ----------------------------- reference (pure JAX) ---------------------------
def _reference(x, conv_w, conv_b, ln_w, ln_b, patch_size, stride):
    p = patch_size // 2
    y = lax.conv_general_dilated(
        x.astype(jnp.float32), conv_w.astype(jnp.float32),
        window_strides=(stride,) * 3, padding=[(p, p)] * 3,
        dimension_numbers=("NCDHW", "OIDHW", "NCDHW"))
    y = y + conv_b.reshape(1, -1, 1, 1, 1)
    B, E, H, W, D = y.shape
    t = y.reshape(B, E, H * W * D).transpose(0, 2, 1)
    mean = t.mean(-1, keepdims=True)
    var = ((t - mean) ** 2).mean(-1, keepdims=True)
    t = (t - mean) / jnp.sqrt(var + LN_EPS) * ln_w + ln_b
    return t, H, W, D


# ---------------------------------- main --------------------------------------
if __name__ == "__main__":
    # Small config (matches UNeXt later-stage OverlapPatchEmbed hyperparams).
    B, C, S = 2, 4, 16           # input (B, C, 16, 16, 16)
    patch_size, stride = 3, 2
    E = 32                       # embed_dim

    key = jax.random.PRNGKey(0)
    k1, k2, k3 = jax.random.split(key, 3)
    x = jax.random.normal(k1, (B, C, S, S, S), dtype=jnp.float32)
    conv_w = 0.05 * jax.random.normal(
        k2, (E, C, patch_size, patch_size, patch_size), dtype=jnp.float32)
    conv_b = 0.01 * jax.random.normal(k3, (E,), dtype=jnp.float32)
    ln_w = jnp.ones((E,), jnp.float32)    # nn.LayerNorm init: weight=1, bias=0
    ln_b = jnp.zeros((E,), jnp.float32)

    tokens, Ho, Wo, Do = overlap_patch_embed(
        x, conv_w, conv_b, ln_w, ln_b, patch_size=patch_size, stride=stride)
    tokens = jax.block_until_ready(tokens)

    ref, Hr, Wr, Dr = _reference(x, conv_w, conv_b, ln_w, ln_b, patch_size, stride)
    assert (int(Ho), int(Wo), int(Do)) == (Hr, Wr, Dr)
    assert tokens.shape == (B, Hr * Wr * Dr, E)
    # bf16 matmul operands (f32 accumulation) -> relaxed tolerance vs f32 ref.
    max_err = float(jnp.max(jnp.abs(tokens - ref)))
    assert jnp.allclose(tokens, ref, rtol=3e-2, atol=3e-2), max_err

    print("KERNEL_OK")
</pallas_src>

<mosaic_0001>
module attributes {stable_mosaic.version = 11 : i64} {
  func.func @_patch_embed_kernel(%arg0: i32, %arg1: memref<128x432xbf16, #tpu.memory_space<vmem>>, %arg2: memref<432x128xbf16, #tpu.memory_space<vmem>>, %arg3: memref<8x128xf32, #tpu.memory_space<vmem>>, %arg4: memref<128x128xbf16, #tpu.memory_space<vmem>>, %arg5: memref<128x128xf32, #tpu.memory_space<vmem>>) attributes {dimension_semantics = [#tpu.dimension_semantics<parallel>], iteration_bounds = array<i64: 2>, scalar_prefetch = 0 : i64, scratch_operands = 0 : i64, tpu.core_type = #tpu.core_type<tc>, window_params = [{transform_indices = @transform_0, window_bounds = array<i64: 128, 432>}, {pipeline_mode = #tpu.pipeline_mode<synchronous>, transform_indices = @transform_1, window_bounds = array<i64: 432, 128>}, {pipeline_mode = #tpu.pipeline_mode<synchronous>, transform_indices = @transform_2, window_bounds = array<i64: 8, 128>}, {pipeline_mode = #tpu.pipeline_mode<synchronous>, transform_indices = @transform_3, window_bounds = array<i64: 128, 128>}, {transform_indices = @transform_4, window_bounds = array<i64: 128, 128>}]} {
    %c0 = arith.constant 0 : index
    %c0_0 = arith.constant 0 : index
    %0 = vector.load %arg1[%c0, %c0_0] : memref<128x432xbf16, #tpu.memory_space<vmem>>, vector<128x432xbf16>
    %c0_1 = arith.constant 0 : index
    %c0_2 = arith.constant 0 : index
    %1 = vector.load %arg2[%c0_1, %c0_2] : memref<432x128xbf16, #tpu.memory_space<vmem>>, vector<432x128xbf16>
    %cst = arith.constant dense<0.000000e+00> : vector<128x128xf32>
    %2 = tpu.matmul %0, %1, %cst {dimension_numbers = #tpu.dot_dimension_numbers<[1], [0], [0], [1], [0, 0, 1, 1], [], []>} : vector<128x432xbf16>, vector<432x128xbf16>, vector<128x128xf32> -> vector<128x128xf32>
    %c0_3 = arith.constant 0 : index
    %c0_4 = arith.constant 0 : index
    %3 = vector.load %arg3[%c0_3, %c0_4] : memref<8x128xf32, #tpu.memory_space<vmem>>, vector<1x128xf32>
    %4 = vector.broadcast %3 : vector<1x128xf32> to vector<128x128xf32>
    %5 = arith.addf %2, %4 : vector<128x128xf32>
    %6 = arith.truncf %5 : vector<128x128xf32> to vector<128x128xbf16>
    %c0_5 = arith.constant 0 : index
    %c0_6 = arith.constant 0 : index
    %7 = vector.load %arg4[%c0_5, %c0_6] : memref<128x128xbf16, #tpu.memory_space<vmem>>, vector<128x128xbf16>
    %cst_7 = arith.constant dense<0.000000e+00> : vector<128x128xf32>
    %8 = tpu.matmul %6, %7, %cst_7 {dimension_numbers = #tpu.dot_dimension_numbers<[1], [0], [0], [1], [0, 0, 1, 1], [], []>} : vector<128x128xbf16>, vector<128x128xbf16>, vector<128x128xf32> -> vector<128x128xf32>
    %9 = arith.mulf %6, %6 : vector<128x128xbf16>
    %c0_8 = arith.constant 0 : index
    %c0_9 = arith.constant 0 : index
    %10 = vector.load %arg4[%c0_8, %c0_9] : memref<128x128xbf16, #tpu.memory_space<vmem>>, vector<128x128xbf16>
    %cst_10 = arith.constant dense<0.000000e+00> : vector<128x128xf32>
    %11 = tpu.matmul %9, %10, %cst_10 {dimension_numbers = #tpu.dot_dimension_numbers<[1], [0], [0], [1], [0, 0, 1, 1], [], []>} : vector<128x128xbf16>, vector<128x128xbf16>, vector<128x128xf32> -> vector<128x128xf32>
    %12 = arith.mulf %8, %8 : vector<128x128xf32>
    %13 = arith.subf %11, %12 : vector<128x128xf32>
    %cst_11 = arith.constant 0.000000e+00 : f32
    %14 = vector.broadcast %cst_11 : f32 to vector<128x128xf32>
    %15 = arith.maximumf %13, %14 : vector<128x128xf32>
    %cst_12 = arith.constant 9.99999974E-6 : f32
    %16 = vector.broadcast %cst_12 : f32 to vector<128x128xf32>
    %17 = arith.addf %15, %16 : vector<128x128xf32>
    %18 = math.rsqrt %17 : vector<128x128xf32>
    %19 = arith.subf %5, %8 : vector<128x128xf32>
    %c1 = arith.constant 1 : index
    %c0_13 = arith.constant 0 : index
    %20 = vector.load %arg3[%c1, %c0_13] : memref<8x128xf32, #tpu.memory_space<vmem>>, vector<1x128xf32>
    %21 = vector.broadcast %20 : vector<1x128xf32> to vector<128x128xf32>
    %22 = arith.mulf %18, %21 : vector<128x128xf32>
    %23 = arith.mulf %19, %22 : vector<128x128xf32>
    %c2 = arith.constant 2 : index
    %c0_14 = arith.constant 0 : index
    %24 = vector.load %arg3[%c2, %c0_14] : memref<8x128xf32, #tpu.memory_space<vmem>>, vector<1x128xf32>
    %25 = vector.broadcast %24 : vector<1x128xf32> to vector<128x128xf32>
    %26 = arith.addf %23, %25 : vector<128x128xf32>
    %c0_15 = arith.constant 0 : index
    %c0_16 = arith.constant 0 : index
    %27 = vector.load %arg5[%c0_15, %c0_16] : memref<128x128xf32, #tpu.memory_space<vmem>>, vector<128x128xf32>
    tpu.vector_store %arg5[%c0_15, %c0_16], %26 {strides = array<i32>} : memref<128x128xf32, #tpu.memory_space<vmem>>, vector<128x128xf32>,
    return
  }
  func.func @transform_0(%arg0: i32) -> (i32, i32) {
    %c0_i32 = arith.constant 0 : i32
    %c0_i32_0 = arith.constant 0 : i32
    return %arg0, %c0_i32 : i32, i32
  }
  func.func @transform_1(%arg0: i32) -> (i32, i32) {
    %c0_i32 = arith.constant 0 : i32
    %c0_i32_0 = arith.constant 0 : i32
    %c0_i32_1 = arith.constant 0 : i32
    return %c0_i32, %c0_i32_0 : i32, i32
  }
  func.func @transform_2(%arg0: i32) -> (i32, i32) {
    %c0_i32 = arith.constant 0 : i32
    %c0_i32_0 = arith.constant 0 : i32
    %c0_i32_1 = arith.constant 0 : i32
    return %c0_i32, %c0_i32_0 : i32, i32
  }
  func.func @transform_3(%arg0: i32) -> (i32, i32) {
    %c0_i32 = arith.constant 0 : i32
    %c0_i32_0 = arith.constant 0 : i32
    %c0_i32_1 = arith.constant 0 : i32
    return %c0_i32, %c0_i32_0 : i32, i32
  }
  func.func @transform_4(%arg0: i32) -> (i32, i32) {
    %c0_i32 = arith.constant 0 : i32
    %c0_i32_0 = arith.constant 0 : i32
    return %arg0, %c0_i32 : i32, i32
  }
}

</mosaic_0001>

<llo_original>
// kernel: tile.18
$region0: #{tile.18}
  #allocation0 [shape = 's32[1]{0}', space=sflag, size = 0x4, scoped, tag = 'scoped memory for tile.18']
  %s0 = inlined_call_operand.vmem [shape: f32[32], index: 0, kind: input, shape index: {}]
  %s1 = inlined_call_operand.vmem [shape: f32[4,32], index: 1, kind: output, shape index: {}]
  // Predicated region
  $region2: #{tile.18} parent=0 // pred_check
    _
  $region3: #{tile.18} parent=0 // pred_check_branch
    %3 = sbr.rel (0) target = $region5
  $region4: #{tile.18} parent=0 // pred_region
    _
  $region5: #{tile.18} parent=0 // pred_fallthru
    _
  %v4 = vld [vmem:[%s0] ss:$0 sm:$0xff]
  %5 = vst [vmem:[%s1] sm:$0xf] %v4

// kernel: overlap_patch_embed.1
$region0: #{overlap_patch_embed.1}
  #allocation0 [shape = 'u32[]', space=smem, size = 0x4, offset = 0x4, fixed_abs, tag = 'smem constant byte address 0x4 - core index']
  #allocation1 [shape = 'u32[72,128]{1,0:T(1,128)}', space=vmem, size = 0x9000, scoped, tag = 'internal scratch']
  %s0 = inlined_call_operand.vmem [shape: bf16[256,432], index: 0, kind: input, shape index: {}]
  %s1 = inlined_call_operand.vmem [shape: bf16[432,128], index: 1, kind: input, shape index: {}]
  %s2 = inlined_call_operand.vmem [shape: f32[8,128], index: 2, kind: input, shape index: {}]
  %s3 = inlined_call_operand.vmem [shape: bf16[128,128], index: 3, kind: input, shape index: {}]
  %s4 = inlined_call_operand.vmem [shape: f32[256,128], index: 4, kind: output, shape index: {}]
  %s5 = sld [smem:[#allocation0]]
  $region49: #{overlap_patch_embed.1} parent=0
    _
  %s7 = ssub.s32 1, %s5
  %s8 = scalar_select 0, %s7, %s5
  loop: start=0, step=1, limit=4
  $region2: #{overlap_patch_embed.1} parent=0 // loop_pre_header
    _
  $region3: #{overlap_patch_embed.1} parent=0 // loop_header
    %s10 = sphi 0, %s14
    %p11 = scmp.ge.s32.totalorder %s10, 4
    %s20 = sphi 0, %s22
    %s23 = sphi 0, %s20
    %s24 = sphi 0, %s23
    %s40 = sphi 0, %s24
    %s44 = sphi 0, %s44
    %s46 = sphi 0, %s44
    %s47 = sphi 0, %s46
    %s61 = sphi 0, %s47
    %s65 = sphi 0, %s65
    %s67 = sphi 0, %s65
    %s68 = sphi 0, %s67
    %s82 = sphi 0, %s68
    %s86 = sphi 0, %s86
    %s88 = sphi 0, %s86
    %s89 = sphi 0, %s88
    %s103 = sphi 0, %s89
    %s109 = sphi 0, %s111
    %s112 = sphi 0, %s109
    %s113 = sphi 0, %s112
    %s129 = sphi 0, %s113
  $region4: #{overlap_patch_embed.1} parent=0 // loop_header_branch
    %13 = sbr.rel (%p11) target = $region8
  $region5: #{overlap_patch_embed.1} parent=0 // loop_body
    %s15 = ssub.s32 %s10, 1
    %s16 = ssub.s32 %s10, 2
    %s17 = sadd.s32 %s10, 1
    %s18 = ssub.s32 %s10, %s17
    %p19 = scmp.eq.s32.totalorder %s18, 0
    %s21 = sadd.s32 %s20, 1
    %s22 = scalar_select %p19, %s20, %s21
    %p25 = pneg %p19
    %p26 = scmp.eq.s32.totalorder %s10, 1
    %p27 = por %p25, %p26
    %p28 = scmp.ne.s32.totalorder %s20, %s23
    %p29 = scmp.eq.s32.totalorder %s10, 0
    %p30 = por %p28, %p29
    %p31 = scmp.ne.s32.totalorder %s20, %s23
    %p32 = scmp.eq.s32.totalorder %s15, 1
    %p33 = por %p31, %p32
    %p34 = scmp.ne.s32.totalorder %s23, %s24
    %p35 = scmp.eq.s32.totalorder %s15, 0
    %p36 = por %p34, %p35
    %p37 = scmp.ne.s32.totalorder %s23, %s24
    %p38 = scmp.eq.s32.totalorder %s16, 1
    %p39 = por %p37, %p38
    %p41 = scmp.ne.s32.totalorder %s24, %s40
    %p42 = scmp.eq.s32.totalorder %s16, 0
    %p43 = por %p41, %p42
    %s45 = sadd.s32 %s44, 1
    %p48 = scmp.eq.s32.totalorder %s10, 1
    %p49 = scmp.ne.s32.totalorder %s44, %s46
    %p50 = scmp.eq.s32.totalorder %s10, 0
    %p51 = por %p49, %p50
    %p52 = scmp.ne.s32.totalorder %s44, %s46
    %p53 = scmp.eq.s32.totalorder %s15, 1
    %p54 = por %p52, %p53
    %p55 = scmp.ne.s32.totalorder %s46, %s47
    %p56 = scmp.eq.s32.totalorder %s15, 0
    %p57 = por %p55, %p56
    %p58 = scmp.ne.s32.totalorder %s46, %s47
    %p59 = scmp.eq.s32.totalorder %s16, 1
    %p60 = por %p58, %p59
    %p62 = scmp.ne.s32.totalorder %s47, %s61
    %p63 = scmp.eq.s32.totalorder %s16, 0
    %p64 = por %p62, %p63
    %s66 = sadd.s32 %s65, 1
    %p69 = scmp.eq.s32.totalorder %s10, 1
    %p70 = scmp.ne.s32.totalorder %s65, %s67
    %p71 = scmp.eq.s32.totalorder %s10, 0
    %p72 = por %p70, %p71
    %p73 = scmp.ne.s32.totalorder %s65, %s67
    %p74 = scmp.eq.s32.totalorder %s15, 1
    %p75 = por %p73, %p74
    %p76 = scmp.ne.s32.totalorder %s67, %s68
    %p77 = scmp.eq.s32.totalorder %s15, 0
    %p78 = por %p76, %p77
    %p79 = scmp.ne.s32.totalorder %s67, %s68
    %p80 = scmp.eq.s32.totalorder %s16, 1
    %p81 = por %p79, %p80
    %p83 = scmp.ne.s32.totalorder %s68, %s82
    %p84 = scmp.eq.s32.totalorder %s16, 0
    %p85 = por %p83, %p84
    %s87 = sadd.s32 %s86, 1
    %p90 = scmp.eq.s32.totalorder %s10, 1
    %p91 = scmp.ne.s32.totalorder %s86, %s88
    %p92 = scmp.eq.s32.totalorder %s10, 0
    %p93 = por %p91, %p92
    %p94 = scmp.ne.s32.totalorder %s86, %s88
    %p95 = scmp.eq.s32.totalorder %s15, 1
    %p96 = por %p94, %p95
    %p97 = scmp.ne.s32.totalorder %s88, %s89
    %p98 = scmp.eq.s32.totalorder %s15, 0
    %p99 = por %p97, %p98
    %p100 = scmp.ne.s32.totalorder %s88, %s89
    %p101 = scmp.eq.s32.totalorder %s16, 1
    %p102 = por %p100, %p101
    %p104 = scmp.ne.s32.totalorder %s89, %s103
    %p105 = scmp.eq.s32.totalorder %s16, 0
    %p106 = por %p104, %p105
    %s107 = ssub.s32 %s10, %s17
    %p108 = scmp.eq.s32.totalorder %s107, 0
    %s110 = sadd.s32 %s109, 1
    %s111 = scalar_select %p108, %s109, %s110
    %p114 = pneg %p108
    %p115 = scmp.eq.s32.totalorder %s10, 1
    %p116 = por %p114, %p115
    %p117 = scmp.ne.s32.totalorder %s109, %s112
    %p118 = scmp.eq.s32.totalorder %s10, 0
    %p119 = por %p117, %p118
    %p120 = scmp.ne.s32.totalorder %s109, %s112
    %p121 = scmp.eq.s32.totalorder %s15, 1
    %p122 = por %p120, %p121
    %p123 = scmp.ne.s32.totalorder %s112, %s113
    %p124 = scmp.eq.s32.totalorder %s15, 0
    %p125 = por %p123, %p124
    %p126 = scmp.ne.s32.totalorder %s112, %s113
    %p127 = scmp.eq.s32.totalorder %s16, 1
    %p128 = por %p126, %p127
    %p130 = scmp.ne.s32.totalorder %s113, %s129
    %p131 = scmp.eq.s32.totalorder %s16, 0
    %p132 = por %p130, %p131
    %p133 = scmp.le.s32.totalorder 1, %s10
    %p134 = scmp.lt.s32.totalorder %s10, 3
    %p135 = pnand %p133, %p134
    %p136 = pneg %p135
    // Predicated region
    $region9: #{overlap_patch_embed.1} parent=5 // pred_check
      _
    $region10: #{overlap_patch_embed.1} parent=5 // pred_check_branch
      %138 = sbr.rel (%p135) target = $region12
    $region11: #{overlap_patch_embed.1} parent=5 // pred_region
      %s139 = ssub.s32 %s10, 1
      // Predicated region
      $region13: #{overlap_patch_embed.1} parent=11 // pred_check
        %p140 = pneg %p57
      $region14: #{overlap_patch_embed.1} parent=11 // pred_check_branch
        %142 = sbr.rel (%p140) target = $region16
      $region15: #{overlap_patch_embed.1} parent=11 // pred_region
        _
      $region16: #{overlap_patch_embed.1} parent=11 // pred_fallthru
        _
      // Predicated region
      $region17: #{overlap_patch_embed.1} parent=11 // pred_check
        %p143 = pneg %p78
      $region18: #{overlap_patch_embed.1} parent=11 // pred_check_branch
        %145 = sbr.rel (%p143) target = $region20
      $region19: #{overlap_patch_embed.1} parent=11 // pred_region
        _
      $region20: #{overlap_patch_embed.1} parent=11 // pred_fallthru
        _
      // Predicated region
      $region21: #{overlap_patch_embed.1} parent=11 // pred_check
        %p146 = pneg %p99
      $region22: #{overlap_patch_embed.1} parent=11 // pred_check_branch
        %148 = sbr.rel (%p146) target = $region24
      $region23: #{overlap_patch_embed.1} parent=11 // pred_region
        _
      $region24: #{overlap_patch_embed.1} parent=11 // pred_fallthru
        _
    $region12: #{overlap_patch_embed.1} parent=5 // pred_fallthru
      _
    %p149 = scmp.lt.s32.totalorder %s10, 2
    // Predicated region
    $region25: #{overlap_patch_embed.1} parent=5 // pred_check
      %p150 = pneg %p149
    $region26: #{overlap_patch_embed.1} parent=5 // pred_check_branch
      %152 = sbr.rel (%p150) target = $region28
    $region27: #{overlap_patch_embed.1} parent=5 // pred_region
      // Predicated region
      $region29: #{overlap_patch_embed.1} parent=27 // pred_check
        %p153 = pneg %p30
      $region30: #{overlap_patch_embed.1} parent=27 // pred_check_branch
        %155 = sbr.rel (%p153) target = $region32
      $region31: #{overlap_patch_embed.1} parent=27 // pred_region
        %s156 = smul.u32 16, %s10
        %p157 = scmp.lt.s32.totalorder %s156, 31
        %s158 = scalar_select %p157, %s156, 31
        %s159 = smul.addr %s158, 4
        %s160 = smul.addr %s159, 4
        %s161 = scalar_lea.vmem %s0, %s160
        %s162 = smul.u32 16, %s10
      $region32: #{overlap_patch_embed.1} parent=27 // pred_fallthru
        _
    $region28: #{overlap_patch_embed.1} parent=5 // pred_fallthru
      _
    %p163 = scmp.le.s32.totalorder 1, %s10
    %p164 = scmp.lt.s32.totalorder %s10, 3
    %p165 = pnand %p163, %p164
    %p166 = pneg %p165
    // Predicated region
    $region33: #{overlap_patch_embed.1} parent=5 // pred_check
      _
    $region34: #{overlap_patch_embed.1} parent=5 // pred_check_branch
      %168 = sbr.rel (%p165) target = $region36
    $region35: #{overlap_patch_embed.1} parent=5 // pred_region
      %s169 = ssub.s32 %s10, 1
      %s170 = smul.u32 16, %s15
      %p171 = scmp.lt.s32.totalorder %s170, 31
      %s172 = scalar_select %p171, %s170, 31
      %s173 = smul.addr %s172, 4
      %s174 = smul.addr %s173, 4
      %s175 = scalar_lea.vmem %s0, %s174
      %p176 = pneg %p36
      %p177 = pneg %p33
      %p178 = pneg %p57
      %p179 = pneg %p54
      %p180 = pneg %p78
      %p181 = pneg %p75
      %p182 = pneg %p99
      %p183 = pneg %p96
      %p184 = pneg %p125
      %p185 = pneg %p122
      %s186 = smul.u32 16, %s15
      %p187 = scmp.lt.s32.totalorder %s186, 31
      %s188 = scalar_select %p187, %s186, 31
      %s189 = smul.addr %s188, 8
      %s190 = scalar_lea.vmem %s4, %s189
      %s191 = smul.u32 16, %s15
      %p192 = scmp.lt.s32.totalorder %s191, 31
      %s193 = scalar_select %p192, %s191, 31
      %s194 = smul.addr %s193, 4
      %s195 = smul.addr %s194, 4
      %s196 = scalar_lea.vmem %s0, %s195
      %s197 = smul.u32 16, %s15
      %s198 = smul.u32 16, %s15
      %p199 = scmp.lt.s32.totalorder %s198, 31
      %s200 = scalar_select %p199, %s198, 31
      %s201 = smul.addr %s200, 8
      %s202 = scalar_lea.vmem %s4, %s201
      %s203 = smul.u32 16, %s15
      %v205 = vld [vmem:[%s196] sm:$0xff]
      %v206 = vld [vmem:[%s196 + $0x8] sm:$0xff]
      %v207 = vld [vmem:[%s196 + $0x10] sm:$0xff]
      %v208 = vld [vmem:[%s196 + $0x18] sm:$0xff]
      %v209 = vld [vmem:[%s196 + $0x20] sm:$0xff]
      %v210 = vld [vmem:[%s196 + $0x28] sm:$0xff]
      %v211 = vld [vmem:[%s196 + $0x30] sm:$0xff]
      %v212 = vld [vmem:[%s196 + $0x38] sm:$0xff]
      %v213 = vld [vmem:[%s196 + $0x40] sm:$0xff]
      %v214 = vld [vmem:[%s196 + $0x48] sm:$0xff]
      %v215 = vld [vmem:[%s196 + $0x50] sm:$0xff]
      %v216 = vld [vmem:[%s196 + $0x58] sm:$0xff]
      %v217 = vld [vmem:[%s196 + $0x60] sm:$0xff]
      %v218 = vld [vmem:[%s196 + $0x68] sm:$0xff]
      %v219 = vld [vmem:[%s196 + $0x70] sm:$0xff]
      %v220 = vld [vmem:[%s196 + $0x78] sm:$0xff]
      %v221 = vld [vmem:[%s196 + $0x80] sm:$0xff]
      %v222 = vld [vmem:[%s196 + $0x88] sm:$0xff]
      %v223 = vld [vmem:[%s196 + $0x90] sm:$0xff]
      %v224 = vld [vmem:[%s196 + $0x98] sm:$0xff]
      %v225 = vld [vmem:[%s196 + $0xa0] sm:$0xff]
      %v226 = vld [vmem:[%s196 + $0xa8] sm:$0xff]
      %v227 = vld [vmem:[%s196 + $0xb0] sm:$0xff]
      %v228 = vld [vmem:[%s196 + $0xb8] sm:$0xff]
      %v229 = vld [vmem:[%s196 + $0xc0] sm:$0xff]
      %v230 = vld [vmem:[%s196 + $0xc8] sm:$0xff]
      %v231 = vld [vmem:[%s196 + $0xd0] sm:$0xff]
      %v232 = vld [vmem:[%s196 + $0xd8] sm:$0xff]
      %v233 = vld [vmem:[%s196 + $0xe0] sm:$0xff]
      %v234 = vld [vmem:[%s196 + $0xe8] sm:$0xff]
      %v235 = vld [vmem:[%s196 + $0xf0] sm:$0xff]
      %v236 = vld [vmem:[%s196 + $0xf8] sm:$0xff]
      %v237 = vld [vmem:[%s1] sm:$0xf]
      %v238 = vld [vmem:[%s1 + $0x4] sm:$0xf]
      %v239 = vld [vmem:[%s1 + $0x8] sm:$0xf]
      %v240 = vld [vmem:[%s1 + $0xc] sm:$0xf]
      %v241 = vld [vmem:[%s1 + $0x10] sm:$0xf]
      %v242 = vld [vmem:[%s1 + $0x14] sm:$0xf]
      %v243 = vld [vmem:[%s1 + $0x18] sm:$0xf]
      %v244 = vld [vmem:[%s1 + $0x1c] sm:$0xf]
      %v245 = vld [vmem:[%s1 + $0x20] sm:$0xf]
      %v246 = vld [vmem:[%s1 + $0x24] sm:$0xf]
      %v247 = vld [vmem:[%s1 + $0x28] sm:$0xf]
      %v248 = vld [vmem:[%s1 + $0x2c] sm:$0xf]
      %v249 = vld [vmem:[%s1 + $0x30] sm:$0xf]
      %v250 = vld [vmem:[%s1 + $0x34] sm:$0xf]
      %v251 = vld [vmem:[%s1 + $0x38] sm:$0xf]
      %v252 = vld [vmem:[%s1 + $0x3c] sm:$0xf]
      %v253 = vld [vmem:[%s1 + $0x40] sm:$0xf]
      %v254 = vld [vmem:[%s1 + $0x44] sm:$0xf]
      %v255 = vld [vmem:[%s1 + $0x48] sm:$0xf]
      %v256 = vld [vmem:[%s1 + $0x4c] sm:$0xf]
      %v257 = vld [vmem:[%s1 + $0x50] sm:$0xf]
      %v258 = vld [vmem:[%s1 + $0x54] sm:$0xf]
      %v259 = vld [vmem:[%s1 + $0x58] sm:$0xf]
      %v260 = vld [vmem:[%s1 + $0x5c] sm:$0xf]
      %v261 = vld [vmem:[%s1 + $0x60] sm:$0xf]
      %v262 = vld [vmem:[%s1 + $0x64] sm:$0xf]
      %v263 = vld [vmem:[%s1 + $0x68] sm:$0xf]
      %v264 = vld [vmem:[%s1 + $0x6c] sm:$0xf]
      %v265 = vld [vmem:[%s1 + $0x70] sm:$0xf]
      %v266 = vld [vmem:[%s1 + $0x74] sm:$0xf]
      %v267 = vld [vmem:[%s1 + $0x78] sm:$0xf]
      %v268 = vld [vmem:[%s1 + $0x7c] sm:$0xf]
      %v269 = vld [vmem:[%s1 + $0x80] sm:$0xf]
      %v270 = vld [vmem:[%s1 + $0x84] sm:$0xf]
      %v271 = vld [vmem:[%s1 + $0x88] sm:$0xf]
      %v272 = vld [vmem:[%s1 + $0x8c] sm:$0xf]
      %v273 = vld [vmem:[%s1 + $0x90] sm:$0xf]
      %v274 = vld [vmem:[%s1 + $0x94] sm:$0xf]
      %v275 = vld [vmem:[%s1 + $0x98] sm:$0xf]
      %v276 = vld [vmem:[%s1 + $0x9c] sm:$0xf]
      %v277 = vld [vmem:[%s1 + $0xa0] sm:$0xf]
      %v278 = vld [vmem:[%s1 + $0xa4] sm:$0xf]
      %v279 = vld [vmem:[%s1 + $0xa8] sm:$0xf]
      %v280 = vld [vmem:[%s1 + $0xac] sm:$0xf]
      %v281 = vld [vmem:[%s1 + $0xb0] sm:$0xf]
      %v282 = vld [vmem:[%s1 + $0xb4] sm:$0xf]
      %v283 = vld [vmem:[%s1 + $0xb8] sm:$0xf]
      %v284 = vld [vmem:[%s1 + $0xbc] sm:$0xf]
      %v285 = vld [vmem:[%s1 + $0xc0] sm:$0xf]
      %v286 = vld [vmem:[%s1 + $0xc4] sm:$0xf]
      %v287 = vld [vmem:[%s1 + $0xc8] sm:$0xf]
      %v288 = vld [vmem:[%s1 + $0xcc] sm:$0xf]
      %v289 = vld [vmem:[%s1 + $0xd0] sm:$0xf]
      %v290 = vld [vmem:[%s1 + $0xd4] sm:$0xf]
      %v291 = vld [vmem:[%s2] sm:$0x1]
      %v292 = vperm.slane %v291, 0
      %v325 = vunpack.c.l.b16 %v205
      %v326 = vunpack.c.h.b16 %v205
      %v327 = vunpack.c.l.b16 %v206
      %v328 = vunpack.c.h.b16 %v206
      %v329 = vunpack.c.l.b16 %v207
      %v330 = vunpack.c.h.b16 %v207
      %v331 = vunpack.c.l.b16 %v208
      %v332 = vunpack.c.h.b16 %v208
      %v333 = vunpack.c.l.b16 %v209
      %v334 = vunpack.c.h.b16 %v209
      %v335 = vunpack.c.l.b16 %v210
      %v336 = vunpack.c.h.b16 %v210
      %v337 = vunpack.c.l.b16 %v211
      %v338 = vunpack.c.h.b16 %v211
      %v339 = vunpack.c.l.b16 %v212
      %v340 = vunpack.c.h.b16 %v212
      %v341 = vunpack.c.l.b16 %v213
      %v342 = vunpack.c.h.b16 %v213
      %v343 = vunpack.c.l.b16 %v214
      %v344 = vunpack.c.h.b16 %v214
      %v345 = vunpack.c.l.b16 %v215
      %v346 = vunpack.c.h.b16 %v215
      %v347 = vunpack.c.l.b16 %v216
      %v348 = vunpack.c.h.b16 %v216
      %v349 = vunpack.c.l.b16 %v217
      %v350 = vunpack.c.h.b16 %v217
      %v351 = vunpack.c.l.b16 %v218
      %v352 = vunpack.c.h.b16 %v218
      %v353 = vunpack.c.l.b16 %v219
      %v354 = vunpack.c.h.b16 %v219
      %v355 = vunpack.c.l.b16 %v220
      %v356 = vunpack.c.h.b16 %v220
      %v357 = vunpack.c.l.b16 %v221
      %v358 = vunpack.c.h.b16 %v221
      %v359 = vunpack.c.l.b16 %v222
      %v360 = vunpack.c.h.b16 %v222
      %v361 = vunpack.c.l.b16 %v223
      %v362 = vunpack.c.h.b16 %v223
      %v363 = vunpack.c.l.b16 %v224
      %v364 = vunpack.c.h.b16 %v224
      %v365 = vunpack.c.l.b16 %v225
      %v366 = vunpack.c.h.b16 %v225
      %v367 = vunpack.c.l.b16 %v226
      %v368 = vunpack.c.h.b16 %v226
      %v369 = vunpack.c.l.b16 %v227
      %v370 = vunpack.c.h.b16 %v227
      %v371 = vunpack.c.l.b16 %v228
      %v372 = vunpack.c.h.b16 %v228
      %v373 = vunpack.c.l.b16 %v229
      %v374 = vunpack.c.h.b16 %v229
      %v375 = vunpack.c.l.b16 %v230
      %v376 = vunpack.c.h.b16 %v230
      %v377 = vunpack.c.l.b16 %v231
      %v378 = vunpack.c.h.b16 %v231
      %v379 = vunpack.c.l.b16 %v232
      %v380 = vunpack.c.h.b16 %v232
      %v381 = vunpack.c.l.b16 %v233
      %v382 = vunpack.c.h.b16 %v233
      %v383 = vunpack.c.l.b16 %v234
      %v384 = vunpack.c.h.b16 %v234
      %v385 = vunpack.c.l.b16 %v235
      %v386 = vunpack.c.h.b16 %v235
      %v387 = vunpack.c.l.b16 %v236
      %v388 = vunpack.c.h.b16 %v236
      %v389 = vpack.c.b16 %v329, %v325
      %v390 = vpack.c.b16 %v330, %v326
      %v391 = vpack.c.b16 %v331, %v327
      %v392 = vpack.c.b16 %v332, %v328
      %v393 = vpack.c.b16 %v337, %v333
      %v394 = vpack.c.b16 %v338, %v334
      %v395 = vpack.c.b16 %v339, %v335
      %v396 = vpack.c.b16 %v340, %v336
      %v397 = vpack.c.b16 %v345, %v341
      %v398 = vpack.c.b16 %v346, %v342
      %v399 = vpack.c.b16 %v347, %v343
      %v400 = vpack.c.b16 %v348, %v344
      %v401 = vpack.c.b16 %v353, %v349
      %v402 = vpack.c.b16 %v354, %v350
      %v403 = vpack.c.b16 %v355, %v351
      %v404 = vpack.c.b16 %v356, %v352
      %v405 = vpack.c.b16 %v361, %v357
      %v406 = vpack.c.b16 %v362, %v358
      %v407 = vpack.c.b16 %v363, %v359
      %v408 = vpack.c.b16 %v364, %v360
      %v409 = vpack.c.b16 %v369, %v365
      %v410 = vpack.c.b16 %v370, %v366
      %v411 = vpack.c.b16 %v371, %v367
      %v412 = vpack.c.b16 %v372, %v368
      %v413 = vpack.c.b16 %v377, %v373
      %v414 = vpack.c.b16 %v378, %v374
      %v415 = vpack.c.b16 %v379, %v375
      %v416 = vpack.c.b16 %v380, %v376
      %v417 = vpack.c.b16 %v385, %v381
      %v418 = vpack.c.b16 %v386, %v382
      %v419 = vpack.c.b16 %v387, %v383
      %v420 = vpack.c.b16 %v388, %v384
      %v499 = vunpack.c.l.b16 %v237
      %v500 = vunpack.c.l.b16 %v238
      %v501 = vunpack.c.l.b16 %v239
      %v502 = vunpack.c.l.b16 %v240
      %v503 = vunpack.c.l.b16 %v241
      %v504 = vunpack.c.l.b16 %v242
      %v505 = vunpack.c.l.b16 %v243
      %v506 = vunpack.c.l.b16 %v244
      %v507 = vunpack.c.l.b16 %v245
      %v508 = vunpack.c.l.b16 %v246
      %v509 = vunpack.c.l.b16 %v247
      %v510 = vunpack.c.l.b16 %v248
      %v511 = vunpack.c.l.b16 %v249
      %v512 = vunpack.c.l.b16 %v250
      %v513 = vunpack.c.l.b16 %v251
      %v514 = vunpack.c.l.b16 %v252
      %v515 = vunpack.c.l.b16 %v253
      %v516 = vunpack.c.l.b16 %v254
      %v517 = vunpack.c.l.b16 %v255
      %v518 = vunpack.c.l.b16 %v256
      %v519 = vunpack.c.l.b16 %v257
      %v520 = vunpack.c.l.b16 %v258
      %v521 = vunpack.c.l.b16 %v259
      %v522 = vunpack.c.l.b16 %v260
      %v523 = vunpack.c.l.b16 %v261
      %v524 = vunpack.c.l.b16 %v262
      %v525 = vunpack.c.l.b16 %v263
      %v526 = vunpack.c.l.b16 %v264
      %v527 = vunpack.c.l.b16 %v265
      %v528 = vunpack.c.l.b16 %v266
      %v529 = vunpack.c.l.b16 %v267
      %v530 = vunpack.c.l.b16 %v268
      %v531 = vunpack.c.l.b16 %v269
      %v532 = vunpack.c.l.b16 %v270
      %v533 = vunpack.c.l.b16 %v271
      %v534 = vunpack.c.l.b16 %v272
      %v535 = vunpack.c.l.b16 %v273
      %v536 = vunpack.c.l.b16 %v274
      %v537 = vunpack.c.l.b16 %v275
      %v538 = vunpack.c.l.b16 %v276
      %v539 = vunpack.c.l.b16 %v277
      %v540 = vunpack.c.l.b16 %v278
      %v541 = vunpack.c.l.b16 %v279
      %v542 = vunpack.c.l.b16 %v280
      %v543 = vunpack.c.l.b16 %v281
      %v544 = vunpack.c.l.b16 %v282
      %v545 = vunpack.c.l.b16 %v283
      %v546 = vunpack.c.l.b16 %v284
      %v547 = vunpack.c.l.b16 %v285
      %v548 = vunpack.c.l.b16 %v286
      %v549 = vunpack.c.l.b16 %v287
      %v550 = vunpack.c.l.b16 %v288
      %v551 = vunpack.c.l.b16 %v289
      %v552 = vunpack.c.l.b16 %v290
      %v553 = vpack.c.b16 %v500, %v499
      %v554 = vpack.c.b16 %v502, %v501
      %v555 = vpack.c.b16 %v504, %v503
      %v556 = vpack.c.b16 %v506, %v505
      %v557 = vpack.c.b16 %v508, %v507
      %v558 = vpack.c.b16 %v510, %v509
      %v559 = vpack.c.b16 %v512, %v511
      %v560 = vpack.c.b16 %v514, %v513
      %v561 = vpack.c.b16 %v516, %v515
      %v562 = vpack.c.b16 %v518, %v517
      %v563 = vpack.c.b16 %v520, %v519
      %v564 = vpack.c.b16 %v522, %v521
      %v565 = vpack.c.b16 %v524, %v523
      %v566 = vpack.c.b16 %v526, %v525
      %v567 = vpack.c.b16 %v528, %v527
      %v568 = vpack.c.b16 %v530, %v529
      %v569 = vpack.c.b16 %v532, %v531
      %v570 = vpack.c.b16 %v534, %v533
      %v571 = vpack.c.b16 %v536, %v535
      %v572 = vpack.c.b16 %v538, %v537
      %v573 = vpack.c.b16 %v540, %v539
      %v574 = vpack.c.b16 %v542, %v541
      %v575 = vpack.c.b16 %v544, %v543
      %v576 = vpack.c.b16 %v546, %v545
      %v577 = vpack.c.b16 %v548, %v547
      %v578 = vpack.c.b16 %v550, %v549
      %v579 = vpack.c.b16 %v552, %v551
      %vm607 = vcmask 392192
      %v609 = vsel %vm607, %v392, 0
      %v612 = vsel %vm607, %v396, 0
      %v615 = vsel %vm607, %v400, 0
      %v618 = vsel %vm607, %v404, 0
      %v621 = vsel %vm607, %v408, 0
      %v624 = vsel %vm607, %v412, 0
      %v627 = vsel %vm607, %v416, 0
      %v630 = vsel %vm607, %v420, 0
      %632 = vmatpush.bf16.msra.mxu0 %v560
      %633 = vmatpush.bf16.msra.mxu0 %v559
      %634 = vmatpush.bf16.msra.mxu0 %v558
      %635 = vmatpush.bf16.msra.mxu0 %v557
      %636 = vmatpush.bf16.msra.mxu0 %v556
      %637 = vmatpush.bf16.msra.mxu0 %v555
      %638 = vmatpush.bf16.msra.mxu0 %v554
      %639 = vmatpush.bf16.msra.mxu0 %v553
      %640 = vmatmul.bf16.gmra.mxu0 %v389
      %v641 = vpop.f32.mrf.mxu0
      %v642 = vadd.f32 %v292, %v641
      %v643 = vpop.f32.mrf.mxu0
      %v644 = vadd.f32 %v292, %v643
      %645 = vmatmul.bf16.gmra.mxu0 %v393
      %v646 = vpop.f32.mrf.mxu0
      %v647 = vadd.f32 %v292, %v646
      %v648 = vpop.f32.mrf.mxu0
      %v649 = vadd.f32 %v292, %v648
      %650 = vmatmul.bf16.gmra.mxu0 %v397
      %v651 = vpop.f32.mrf.mxu0
      %v652 = vadd.f32 %v292, %v651
      %v653 = vpop.f32.mrf.mxu0
      %v654 = vadd.f32 %v292, %v653
      %655 = vmatmul.bf16.gmra.mxu0 %v401
      %v656 = vpop.f32.mrf.mxu0
      %v657 = vadd.f32 %v292, %v656
      %v658 = vpop.f32.mrf.mxu0
      %v659 = vadd.f32 %v292, %v658
      %660 = vmatmul.bf16.gmra.mxu0 %v405
      %v661 = vpop.f32.mrf.mxu0
      %v662 = vadd.f32 %v292, %v661
      %v663 = vpop.f32.mrf.mxu0
      %v664 = vadd.f32 %v292, %v663
      %665 = vmatmul.bf16.gmra.mxu0 %v409
      %v666 = vpop.f32.mrf.mxu0
      %v667 = vadd.f32 %v292, %v666
      %v668 = vpop.f32.mrf.mxu0
      %v669 = vadd.f32 %v292, %v668
      %670 = vmatmul.bf16.gmra.mxu0 %v413
      %v671 = vpop.f32.mrf.mxu0
      %v672 = vadd.f32 %v292, %v671
      %v673 = vpop.f32.mrf.mxu0
      %v674 = vadd.f32 %v292, %v673
      %675 = vmatmul.bf16.gmra.mxu0 %v417
      %v676 = vpop.f32.mrf.mxu0
      %v677 = vadd.f32 %v292, %v676
      %v678 = vpop.f32.mrf.mxu0
      %v679 = vadd.f32 %v292, %v678
      %680 = vdwg.mxu0
      %681 = vmatpush.bf16.msra.mxu0 %v568
      %682 = vmatpush.bf16.msra.mxu0 %v567
      %683 = vmatpush.bf16.msra.mxu0 %v566
      %684 = vmatpush.bf16.msra.mxu0 %v565
      %685 = vmatpush.bf16.msra.mxu0 %v564
      %686 = vmatpush.bf16.msra.mxu0 %v563
      %687 = vmatpush.bf16.msra.mxu0 %v562
      %688 = vmatpush.bf16.msra.mxu0 %v561
      %689 = vmatmul.bf16.gmra.mxu0 %v390
      %v690 = vpop.f32.mrf.mxu0
      %v691 = vadd.f32 %v642, %v690
      %v692 = vpop.f32.mrf.mxu0
      %v693 = vadd.f32 %v644, %v692
      %694 = vmatmul.bf16.gmra.mxu0 %v394
      %v695 = vpop.f32.mrf.mxu0
      %v696 = vadd.f32 %v647, %v695
      %v697 = vpop.f32.mrf.mxu0
      %v698 = vadd.f32 %v649, %v697
      %699 = vmatmul.bf16.gmra.mxu0 %v398
      %v700 = vpop.f32.mrf.mxu0
      %v701 = vadd.f32 %v652, %v700
      %v702 = vpop.f32.mrf.mxu0
      %v703 = vadd.f32 %v654, %v702
      %704 = vmatmul.bf16.gmra.mxu0 %v402
      %v705 = vpop.f32.mrf.mxu0
      %v706 = vadd.f32 %v657, %v705
      %v707 = vpop.f32.mrf.mxu0
      %v708 = vadd.f32 %v659, %v707
      %709 = vmatmul.bf16.gmra.mxu0 %v406
      %v710 = vpop.f32.mrf.mxu0
      %v711 = vadd.f32 %v662, %v710
      %v712 = vpop.f32.mrf.mxu0
      %v713 = vadd.f32 %v664, %v712
      %714 = vmatmul.bf16.gmra.mxu0 %v410
      %v715 = vpop.f32.mrf.mxu0
      %v716 = vadd.f32 %v667, %v715
      %v717 = vpop.f32.mrf.mxu0
      %v718 = vadd.f32 %v669, %v717
      %719 = vmatmul.bf16.gmra.mxu0 %v414
      %v720 = vpop.f32.mrf.mxu0
      %v721 = vadd.f32 %v672, %v720
      %v722 = vpop.f32.mrf.mxu0
      %v723 = vadd.f32 %v674, %v722
      %724 = vmatmul.bf16.gmra.mxu0 %v418
      %v725 = vpop.f32.mrf.mxu0
      %v726 = vadd.f32 %v677, %v725
      %v727 = vpop.f32.mrf.mxu0
      %v728 = vadd.f32 %v679, %v727
      %729 = vdwg.mxu0
      %730 = vmatpush.bf16.msra.mxu0 %v576
      %731 = vmatpush.bf16.msra.mxu0 %v575
      %732 = vmatpush.bf16.msra.mxu0 %v574
      %733 = vmatpush.bf16.msra.mxu0 %v573
      %734 = vmatpush.bf16.msra.mxu0 %v572
      %735 = vmatpush.bf16.msra.mxu0 %v571
      %736 = vmatpush.bf16.msra.mxu0 %v570
      %737 = vmatpush.bf16.msra.mxu0 %v569
      %738 = vmatmul.bf16.gmra.mxu0 %v391
      %v739 = vpop.f32.mrf.mxu0
      %v740 = vadd.f32 %v691, %v739
      %v741 = vpop.f32.mrf.mxu0
      %v742 = vadd.f32 %v693, %v741
      %743 = vmatmul.bf16.gmra.mxu0 %v395
      %v744 = vpop.f32.mrf.mxu0
      %v745 = vadd.f32 %v696, %v744
      %v746 = vpop.f32.mrf.mxu0
      %v747 = vadd.f32 %v698, %v746
      %748 = vmatmul.bf16.gmra.mxu0 %v399
      %v749 = vpop.f32.mrf.mxu0
      %v750 = vadd.f32 %v701, %v749
      %v751 = vpop.f32.mrf.mxu0
      %v752 = vadd.f32 %v703, %v751
      %753 = vmatmul.bf16.gmra.mxu0 %v403
      %v754 = vpop.f32.mrf.mxu0
      %v755 = vadd.f32 %v706, %v754
      %v756 = vpop.f32.mrf.mxu0
      %v757 = vadd.f32 %v708, %v756
      %758 = vmatmul.bf16.gmra.mxu0 %v407
      %v759 = vpop.f32.mrf.mxu0
      %v760 = vadd.f32 %v711, %v759
      %v761 = vpop.f32.mrf.mxu0
      %v762 = vadd.f32 %v713, %v761
      %763 = vmatmul.bf16.gmra.mxu0 %v411
      %v764 = vpop.f32.mrf.mxu0
      %v765 = vadd.f32 %v716, %v764
      %v766 = vpop.f32.mrf.mxu0
      %v767 = vadd.f32 %v718, %v766
      %768 = vmatmul.bf16.gmra.mxu0 %v415
      %v769 = vpop.f32.mrf.mxu0
      %v770 = vadd.f32 %v721, %v769
      %v771 = vpop.f32.mrf.mxu0
      %v772 = vadd.f32 %v723, %v771
      %773 = vmatmul.bf16.gmra.mxu0 %v419
      %v774 = vpop.f32.mrf.mxu0
      %v775 = vadd.f32 %v726, %v774
      %v776 = vpop.f32.mrf.mxu0
      %v777 = vadd.f32 %v728, %v776
      %778 = vdwg.mxu0
      %779 = vmatpush.bf16.msra.mxu0 0
      %780 = vmatpush.bf16.msra.mxu0 0
      %781 = vmatpush.bf16.msra.mxu0 0
      %782 = vmatpush.bf16.msra.mxu0 0
      %783 = vmatpush.bf16.msra.mxu0 0
      %784 = vmatpush.bf16.msra.mxu0 %v579
      %785 = vmatpush.bf16.msra.mxu0 %v578
      %786 = vmatpush.bf16.msra.mxu0 %v577
      %787 = vmatmul.bf16.gmra.mxu0 %v609
      %v788 = vpop.f32.mrf.mxu0
      %v789 = vadd.f32 %v740, %v788
      %v790 = vpop.f32.mrf.mxu0
      %v791 = vadd.f32 %v742, %v790
      %792 = vmatmul.bf16.gmra.mxu0 %v612
      %v793 = vpop.f32.mrf.mxu0
      %v794 = vadd.f32 %v745, %v793
      %v795 = vpop.f32.mrf.mxu0
      %v796 = vadd.f32 %v747, %v795
      %797 = vmatmul.bf16.gmra.mxu0 %v615
      %v798 = vpop.f32.mrf.mxu0
      %v799 = vadd.f32 %v750, %v798
      %v800 = vpop.f32.mrf.mxu0
      %v801 = vadd.f32 %v752, %v800
      %802 = vmatmul.bf16.gmra.mxu0 %v618
      %v803 = vpop.f32.mrf.mxu0
      %v804 = vadd.f32 %v755, %v803
      %v805 = vpop.f32.mrf.mxu0
      %v806 = vadd.f32 %v757, %v805
      %807 = vmatmul.bf16.gmra.mxu0 %v621
      %v808 = vpop.f32.mrf.mxu0
      %v809 = vadd.f32 %v760, %v808
      %v810 = vpop.f32.mrf.mxu0
      %v811 = vadd.f32 %v762, %v810
      %812 = vmatmul.bf16.gmra.mxu0 %v624
      %v813 = vpop.f32.mrf.mxu0
      %v814 = vadd.f32 %v765, %v813
      %v815 = vpop.f32.mrf.mxu0
      %v816 = vadd.f32 %v767, %v815
      %817 = vmatmul.bf16.gmra.mxu0 %v627
      %v818 = vpop.f32.mrf.mxu0
      %v819 = vadd.f32 %v770, %v818
      %v820 = vpop.f32.mrf.mxu0
      %v821 = vadd.f32 %v772, %v820
      %822 = vmatmul.bf16.gmra.mxu0 %v630
      %v823 = vpop.f32.mrf.mxu0
      %v824 = vadd.f32 %v775, %v823
      %v825 = vpop.f32.mrf.mxu0
      %v826 = vadd.f32 %v777, %v825
      %827 = vdwg.mxu0
      %v828 = vpack.c.bf16 %v789, %v789
      %v829 = vpack.c.bf16 %v791, %v791
      %v830 = vpack.c.bf16 %v794, %v794
      %v831 = vpack.c.bf16 %v796, %v796
      %v832 = vpack.c.bf16 %v799, %v799
      %v833 = vpack.c.bf16 %v801, %v801
      %v834 = vpack.c.bf16 %v804, %v804
      %v835 = vpack.c.bf16 %v806, %v806
      %v836 = vpack.c.bf16 %v809, %v809
      %v837 = vpack.c.bf16 %v811, %v811
      %v838 = vpack.c.bf16 %v814, %v814
      %v839 = vpack.c.bf16 %v816, %v816
      %v840 = vpack.c.bf16 %v819, %v819
      %v841 = vpack.c.bf16 %v821, %v821
      %v842 = vpack.c.bf16 %v824, %v824
      %v843 = vpack.c.bf16 %v826, %v826
      %v844 = vld [vmem:[%s3] sm:$0xf]
      %v845 = vld [vmem:[%s3 + $0x4] sm:$0xf]
      %v846 = vld [vmem:[%s3 + $0x8] sm:$0xf]
      %v847 = vld [vmem:[%s3 + $0xc] sm:$0xf]
      %v848 = vld [vmem:[%s3 + $0x10] sm:$0xf]
      %v849 = vld [vmem:[%s3 + $0x14] sm:$0xf]
      %v850 = vld [vmem:[%s3 + $0x18] sm:$0xf]
      %v851 = vld [vmem:[%s3 + $0x1c] sm:$0xf]
      %v852 = vld [vmem:[%s3 + $0x20] sm:$0xf]
      %v853 = vld [vmem:[%s3 + $0x24] sm:$0xf]
      %v854 = vld [vmem:[%s3 + $0x28] sm:$0xf]
      %v855 = vld [vmem:[%s3 + $0x2c] sm:$0xf]
      %v856 = vld [vmem:[%s3 + $0x30] sm:$0xf]
      %v857 = vld [vmem:[%s3 + $0x34] sm:$0xf]
      %v858 = vld [vmem:[%s3 + $0x38] sm:$0xf]
      %v859 = vld [vmem:[%s3 + $0x3c] sm:$0xf]
      %v876 = vunpack.c.l.b16 %v828
      %v877 = vunpack.c.l.b16 %v829
      %v878 = vunpack.c.l.b16 %v830
      %v879 = vunpack.c.l.b16 %v831
      %v880 = vunpack.c.l.b16 %v832
      %v881 = vunpack.c.l.b16 %v833
      %v882 = vunpack.c.l.b16 %v834
      %v883 = vunpack.c.l.b16 %v835
      %v884 = vunpack.c.l.b16 %v836
      %v885 = vunpack.c.l.b16 %v837
      %v886 = vunpack.c.l.b16 %v838
      %v887 = vunpack.c.l.b16 %v839
      %v888 = vunpack.c.l.b16 %v840
      %v889 = vunpack.c.l.b16 %v841
      %v890 = vunpack.c.l.b16 %v842
      %v891 = vunpack.c.l.b16 %v843
      %v892 = vpack.c.b16 %v877, %v876
      %v893 = vpack.c.b16 %v879, %v878
      %v894 = vpack.c.b16 %v881, %v880
      %v895 = vpack.c.b16 %v883, %v882
      %v896 = vpack.c.b16 %v885, %v884
      %v897 = vpack.c.b16 %v887, %v886
      %v898 = vpack.c.b16 %v889, %v888
      %v899 = vpack.c.b16 %v891, %v890
      %v924 = vunpack.c.l.b16 %v844
      %v925 = vunpack.c.l.b16 %v845
      %v926 = vunpack.c.l.b16 %v846
      %v927 = vunpack.c.l.b16 %v847
      %v928 = vunpack.c.l.b16 %v848
      %v929 = vunpack.c.l.b16 %v849
      %v930 = vunpack.c.l.b16 %v850
      %v931 = vunpack.c.l.b16 %v851
      %v932 = vunpack.c.l.b16 %v852
      %v933 = vunpack.c.l.b16 %v853
      %v934 = vunpack.c.l.b16 %v854
      %v935 = vunpack.c.l.b16 %v855
      %v936 = vunpack.c.l.b16 %v856
      %v937 = vunpack.c.l.b16 %v857
      %v938 = vunpack.c.l.b16 %v858
      %v939 = vunpack.c.l.b16 %v859
      %v940 = vpack.c.b16 %v925, %v924
      %v941 = vpack.c.b16 %v927, %v926
      %v942 = vpack.c.b16 %v929, %v928
      %v943 = vpack.c.b16 %v931, %v930
      %v944 = vpack.c.b16 %v933, %v932
      %v945 = vpack.c.b16 %v935, %v934
      %v946 = vpack.c.b16 %v937, %v936
      %v947 = vpack.c.b16 %v939, %v938
      %956 = vmatpush.bf16.msra.mxu0 %v947
      %957 = vmatpush.bf16.msra.mxu0 %v946
      %958 = vmatpush.bf16.msra.mxu0 %v945
      %959 = vmatpush.bf16.msra.mxu0 %v944
      %960 = vmatpush.bf16.msra.mxu0 %v943
      %961 = vmatpush.bf16.msra.mxu0 %v942
      %962 = vmatpush.bf16.msra.mxu0 %v941
      %963 = vmatpush.bf16.msra.mxu0 %v940
      %964 = vmatmul.bf16.gmra.mxu0 %v892
      %v965 = vpop.f32.mrf.mxu0
      %v966 = vadd.f32 0.0, %v965
      %v967 = vpop.f32.mrf.mxu0
      %v968 = vadd.f32 0.0, %v967
      %969 = vmatmul.bf16.gmra.mxu0 %v893
      %v970 = vpop.f32.mrf.mxu0
      %v971 = vadd.f32 0.0, %v970
      %v972 = vpop.f32.mrf.mxu0
      %v973 = vadd.f32 0.0, %v972
      %974 = vmatmul.bf16.gmra.mxu0 %v894
      %v975 = vpop.f32.mrf.mxu0
      %v976 = vadd.f32 0.0, %v975
      %v977 = vpop.f32.mrf.mxu0
      %v978 = vadd.f32 0.0, %v977
      %979 = vmatmul.bf16.gmra.mxu0 %v895
      %v980 = vpop.f32.mrf.mxu0
      %v981 = vadd.f32 0.0, %v980
      %v982 = vpop.f32.mrf.mxu0
      %v983 = vadd.f32 0.0, %v982
      %984 = vmatmul.bf16.gmra.mxu0 %v896
      %v985 = vpop.f32.mrf.mxu0
      %v986 = vadd.f32 0.0, %v985
      %v987 = vpop.f32.mrf.mxu0
      %v988 = vadd.f32 0.0, %v987
      %989 = vmatmul.bf16.gmra.mxu0 %v897
      %v990 = vpop.f32.mrf.mxu0
      %v991 = vadd.f32 0.0, %v990
      %v992 = vpop.f32.mrf.mxu0
      %v993 = vadd.f32 0.0, %v992
      %994 = vmatmul.bf16.gmra.mxu0 %v898
      %v995 = vpop.f32.mrf.mxu0
      %v996 = vadd.f32 0.0, %v995
      %v997 = vpop.f32.mrf.mxu0
      %v998 = vadd.f32 0.0, %v997
      %999 = vmatmul.bf16.gmra.mxu0 %v899
      %v1000 = vpop.f32.mrf.mxu0
      %v1001 = vadd.f32 0.0, %v1000
      %v1002 = vpop.f32.mrf.mxu0
      %v1003 = vadd.f32 0.0, %v1002
      %1004 = vdwg.mxu0
      %v1005 = vunpack.c.l.bf16 %v828
      %v1006 = vunpack.c.l.bf16 %v829
      %v1007 = vunpack.c.l.bf16 %v830
      %v1008 = vunpack.c.l.bf16 %v831
      %v1009 = vunpack.c.l.bf16 %v832
      %v1010 = vunpack.c.l.bf16 %v833
      %v1011 = vunpack.c.l.bf16 %v834
      %v1012 = vunpack.c.l.bf16 %v835
      %v1013 = vunpack.c.l.bf16 %v836
      %v1014 = vunpack.c.l.bf16 %v837
      %v1015 = vunpack.c.l.bf16 %v838
      %v1016 = vunpack.c.l.bf16 %v839
      %v1017 = vunpack.c.l.bf16 %v840
      %v1018 = vunpack.c.l.bf16 %v841
      %v1019 = vunpack.c.l.bf16 %v842
      %v1020 = vunpack.c.l.bf16 %v843
      %v1021 = vmul.f32 %v1005, %v1005
      %v1022 = vmul.f32 %v1006, %v1006
      %v1023 = vmul.f32 %v1007, %v1007
      %v1024 = vmul.f32 %v1008, %v1008
      %v1025 = vmul.f32 %v1009, %v1009
      %v1026 = vmul.f32 %v1010, %v1010
      %v1027 = vmul.f32 %v1011, %v1011
      %v1028 = vmul.f32 %v1012, %v1012
      %v1029 = vmul.f32 %v1013, %v1013
      %v1030 = vmul.f32 %v1014, %v1014
      %v1031 = vmul.f32 %v1015, %v1015
      %v1032 = vmul.f32 %v1016, %v1016
      %v1033 = vmul.f32 %v1017, %v1017
      %v1034 = vmul.f32 %v1018, %v1018
      %v1035 = vmul.f32 %v1019, %v1019
      %v1036 = vmul.f32 %v1020, %v1020
      %v1037 = vpack.c.bf16 %v1022, %v1021
      %v1038 = vpack.c.bf16 %v1024, %v1023
      %v1039 = vpack.c.bf16 %v1026, %v1025
      %v1040 = vpack.c.bf16 %v1028, %v1027
      %v1041 = vpack.c.bf16 %v1030, %v1029
      %v1042 = vpack.c.bf16 %v1032, %v1031
      %v1043 = vpack.c.bf16 %v1034, %v1033
      %v1044 = vpack.c.bf16 %v1036, %v1035
      %1045 = vmatpush.bf16.msra.mxu0 %v947
      %1046 = vmatpush.bf16.msra.mxu0 %v946
      %1047 = vmatpush.bf16.msra.mxu0 %v945
      %1048 = vmatpush.bf16.msra.mxu0 %v944
      %1049 = vmatpush.bf16.msra.mxu0 %v943
      %1050 = vmatpush.bf16.msra.mxu0 %v942
      %1051 = vmatpush.bf16.msra.mxu0 %v941
      %1052 = vmatpush.bf16.msra.mxu0 %v940
      %1053 = vmatmul.bf16.gmra.mxu0 %v1037
      %v1054 = vpop.f32.mrf.mxu0
      %v1055 = vadd.f32 0.0, %v1054
      %v1056 = vpop.f32.mrf.mxu0
      %v1057 = vadd.f32 0.0, %v1056
      %1058 = vmatmul.bf16.gmra.mxu0 %v1038
      %v1059 = vpop.f32.mrf.mxu0
      %v1060 = vadd.f32 0.0, %v1059
      %v1061 = vpop.f32.mrf.mxu0
      %v1062 = vadd.f32 0.0, %v1061
      %1063 = vmatmul.bf16.gmra.mxu0 %v1039
      %v1064 = vpop.f32.mrf.mxu0
      %v1065 = vadd.f32 0.0, %v1064
      %v1066 = vpop.f32.mrf.mxu0
      %v1067 = vadd.f32 0.0, %v1066
      %1068 = vmatmul.bf16.gmra.mxu0 %v1040
      %v1069 = vpop.f32.mrf.mxu0
      %v1070 = vadd.f32 0.0, %v1069
      %v1071 = vpop.f32.mrf.mxu0
      %v1072 = vadd.f32 0.0, %v1071
      %1073 = vmatmul.bf16.gmra.mxu0 %v1041
      %v1074 = vpop.f32.mrf.mxu0
      %v1075 = vadd.f32 0.0, %v1074
      %v1076 = vpop.f32.mrf.mxu0
      %v1077 = vadd.f32 0.0, %v1076
      %1078 = vmatmul.bf16.gmra.mxu0 %v1042
      %v1079 = vpop.f32.mrf.mxu0
      %v1080 = vadd.f32 0.0, %v1079
      %v1081 = vpop.f32.mrf.mxu0
      %v1082 = vadd.f32 0.0, %v1081
      %1083 = vmatmul.bf16.gmra.mxu0 %v1043
      %v1084 = vpop.f32.mrf.mxu0
      %v1085 = vadd.f32 0.0, %v1084
      %v1086 = vpop.f32.mrf.mxu0
      %v1087 = vadd.f32 0.0, %v1086
      %1088 = vmatmul.bf16.gmra.mxu0 %v1044
      %v1089 = vpop.f32.mrf.mxu0
      %v1090 = vadd.f32 0.0, %v1089
      %v1091 = vpop.f32.mrf.mxu0
      %v1092 = vadd.f32 0.0, %v1091
      %1093 = vdwg.mxu0
      %v1094 = vmul.f32 %v966, %v966
      %v1095 = vmul.f32 %v968, %v968
      %v1096 = vmul.f32 %v971, %v971
      %v1097 = vmul.f32 %v973, %v973
      %v1098 = vmul.f32 %v976, %v976
      %v1099 = vmul.f32 %v978, %v978
      %v1100 = vmul.f32 %v981, %v981
      %v1101 = vmul.f32 %v983, %v983
      %v1102 = vmul.f32 %v986, %v986
      %v1103 = vmul.f32 %v988, %v988
      %v1104 = vmul.f32 %v991, %v991
      %v1105 = vmul.f32 %v993, %v993
      %v1106 = vmul.f32 %v996, %v996
      %v1107 = vmul.f32 %v998, %v998
      %v1108 = vmul.f32 %v1001, %v1001
      %v1109 = vmul.f32 %v1003, %v1003
      %v1110 = vsub.f32 %v1055, %v1094
      %v1111 = vsub.f32 %v1057, %v1095
      %v1112 = vsub.f32 %v1060, %v1096
      %v1113 = vsub.f32 %v1062, %v1097
      %v1114 = vsub.f32 %v1065, %v1098
      %v1115 = vsub.f32 %v1067, %v1099
      %v1116 = vsub.f32 %v1070, %v1100
      %v1117 = vsub.f32 %v1072, %v1101
      %v1118 = vsub.f32 %v1075, %v1102
      %v1119 = vsub.f32 %v1077, %v1103
      %v1120 = vsub.f32 %v1080, %v1104
      %v1121 = vsub.f32 %v1082, %v1105
      %v1122 = vsub.f32 %v1085, %v1106
      %v1123 = vsub.f32 %v1087, %v1107
      %v1124 = vsub.f32 %v1090, %v1108
      %v1125 = vsub.f32 %v1092, %v1109
      %v1126 = vmax.f32 %v1110, 0.0
      %v1127 = vmax.f32 %v1111, 0.0
      %v1128 = vmax.f32 %v1112, 0.0
      %v1129 = vmax.f32 %v1113, 0.0
      %v1130 = vmax.f32 %v1114, 0.0
      %v1131 = vmax.f32 %v1115, 0.0
      %v1132 = vmax.f32 %v1116, 0.0
      %v1133 = vmax.f32 %v1117, 0.0
      %v1134 = vmax.f32 %v1118, 0.0
      %v1135 = vmax.f32 %v1119, 0.0
      %v1136 = vmax.f32 %v1120, 0.0
      %v1137 = vmax.f32 %v1121, 0.0
      %v1138 = vmax.f32 %v1122, 0.0
      %v1139 = vmax.f32 %v1123, 0.0
      %v1140 = vmax.f32 %v1124, 0.0
      %v1141 = vmax.f32 %v1125, 0.0
      %v1142 = vadd.f32 %v1126, 1e-05
      %v1143 = vadd.f32 %v1127, 1e-05
      %v1144 = vadd.f32 %v1128, 1e-05
      %v1145 = vadd.f32 %v1129, 1e-05
      %v1146 = vadd.f32 %v1130, 1e-05
      %v1147 = vadd.f32 %v1131, 1e-05
      %v1148 = vadd.f32 %v1132, 1e-05
      %v1149 = vadd.f32 %v1133, 1e-05
      %v1150 = vadd.f32 %v1134, 1e-05
      %v1151 = vadd.f32 %v1135, 1e-05
      %v1152 = vadd.f32 %v1136, 1e-05
      %v1153 = vadd.f32 %v1137, 1e-05
      %v1154 = vadd.f32 %v1138, 1e-05
      %v1155 = vadd.f32 %v1139, 1e-05
      %v1156 = vadd.f32 %v1140, 1e-05
      %v1157 = vadd.f32 %v1141, 1e-05
      %v1158 = vrsqrt.pop %v1142
      %v1159 = vmul.f32 %v1158, %v1142
      %v1160 = vmul.f32 %v1159, %v1158
      %v1161 = vmul.f32 0.5, %v1160
      %v1162 = vsub.f32 1.5, %v1161
      %v1163 = vmul.f32 %v1158, %v1162
      %vm1164 = vweird.f32 %v1142
      %vm1165 = vweird.f32 %v1158
      %vm1166 = vmor %vm1164, %vm1165
      %v1167 = vsel %vm1166, %v1158, %v1163
      %v1168 = vrsqrt.pop %v1143
      %v1169 = vmul.f32 %v1168, %v1143
      %v1170 = vmul.f32 %v1169, %v1168
      %v1171 = vmul.f32 0.5, %v1170
      %v1172 = vsub.f32 1.5, %v1171
      %v1173 = vmul.f32 %v1168, %v1172
      %vm1174 = vweird.f32 %v1143
      %vm1175 = vweird.f32 %v1168
      %vm1176 = vmor %vm1174, %vm1175
      %v1177 = vsel %vm1176, %v1168, %v1173
      %v1178 = vrsqrt.pop %v1144
      %v1179 = vmul.f32 %v1178, %v1144
      %v1180 = vmul.f32 %v1179, %v1178
      %v1181 = vmul.f32 0.5, %v1180
      %v1182 = vsub.f32 1.5, %v1181
      %v1183 = vmul.f32 %v1178, %v1182
      %vm1184 = vweird.f32 %v1144
      %vm1185 = vweird.f32 %v1178
      %vm1186 = vmor %vm1184, %vm1185
      %v1187 = vsel %vm1186, %v1178, %v1183
      %v1188 = vrsqrt.pop %v1145
      %v1189 = vmul.f32 %v1188, %v1145
      %v1190 = vmul.f32 %v1189, %v1188
      %v1191 = vmul.f32 0.5, %v1190
      %v1192 = vsub.f32 1.5, %v1191
      %v1193 = vmul.f32 %v1188, %v1192
      %vm1194 = vweird.f32 %v1145
      %vm1195 = vweird.f32 %v1188
      %vm1196 = vmor %vm1194, %vm1195
      %v1197 = vsel %vm1196, %v1188, %v1193
      %v1198 = vrsqrt.pop %v1146
      %v1199 = vmul.f32 %v1198, %v1146
      %v1200 = vmul.f32 %v1199, %v1198
      %v1201 = vmul.f32 0.5, %v1200
      %v1202 = vsub.f32 1.5, %v1201
      %v1203 = vmul.f32 %v1198, %v1202
      %vm1204 = vweird.f32 %v1146
      %vm1205 = vweird.f32 %v1198
      %vm1206 = vmor %vm1204, %vm1205
      %v1207 = vsel %vm1206, %v1198, %v1203
      %v1208 = vrsqrt.pop %v1147
      %v1209 = vmul.f32 %v1208, %v1147
      %v1210 = vmul.f32 %v1209, %v1208
      %v1211 = vmul.f32 0.5, %v1210
      %v1212 = vsub.f32 1.5, %v1211
      %v1213 = vmul.f32 %v1208, %v1212
      %vm1214 = vweird.f32 %v1147
      %vm1215 = vweird.f32 %v1208
      %vm1216 = vmor %vm1214, %vm1215
      %v1217 = vsel %vm1216, %v1208, %v1213
      %v1218 = vrsqrt.pop %v1148
      %v1219 = vmul.f32 %v1218, %v1148
      %v1220 = vmul.f32 %v1219, %v1218
      %v1221 = vmul.f32 0.5, %v1220
      %v1222 = vsub.f32 1.5, %v1221
      %v1223 = vmul.f32 %v1218, %v1222
      %vm1224 = vweird.f32 %v1148
      %vm1225 = vweird.f32 %v1218
      %vm1226 = vmor %vm1224, %vm1225
      %v1227 = vsel %vm1226, %v1218, %v1223
      %v1228 = vrsqrt.pop %v1149
      %v1229 = vmul.f32 %v1228, %v1149
      %v1230 = vmul.f32 %v1229, %v1228
      %v1231 = vmul.f32 0.5, %v1230
      %v1232 = vsub.f32 1.5, %v1231
      %v1233 = vmul.f32 %v1228, %v1232
      %vm1234 = vweird.f32 %v1149
      %vm1235 = vweird.f32 %v1228
      %vm1236 = vmor %vm1234, %vm1235
      %v1237 = vsel %vm1236, %v1228, %v1233
      %v1238 = vrsqrt.pop %v1150
      %v1239 = vmul.f32 %v1238, %v1150
      %v1240 = vmul.f32 %v1239, %v1238
      %v1241 = vmul.f32 0.5, %v1240
      %v1242 = vsub.f32 1.5, %v1241
      %v1243 = vmul.f32 %v1238, %v1242
      %vm1244 = vweird.f32 %v1150
      %vm1245 = vweird.f32 %v1238
      %vm1246 = vmor %vm1244, %vm1245
      %v1247 = vsel %vm1246, %v1238, %v1243
      %v1248 = vrsqrt.pop %v1151
      %v1249 = vmul.f32 %v1248, %v1151
      %v1250 = vmul.f32 %v1249, %v1248
      %v1251 = vmul.f32 0.5, %v1250
      %v1252 = vsub.f32 1.5, %v1251
      %v1253 = vmul.f32 %v1248, %v1252
      %vm1254 = vweird.f32 %v1151
      %vm1255 = vweird.f32 %v1248
      %vm1256 = vmor %vm1254, %vm1255
      %v1257 = vsel %vm1256, %v1248, %v1253
      %v1258 = vrsqrt.pop %v1152
      %v1259 = vmul.f32 %v1258, %v1152
      %v1260 = vmul.f32 %v1259, %v1258
      %v1261 = vmul.f32 0.5, %v1260
      %v1262 = vsub.f32 1.5, %v1261
      %v1263 = vmul.f32 %v1258, %v1262
      %vm1264 = vweird.f32 %v1152
      %vm1265 = vweird.f32 %v1258
      %vm1266 = vmor %vm1264, %vm1265
      %v1267 = vsel %vm1266, %v1258, %v1263
      %v1268 = vrsqrt.pop %v1153
      %v1269 = vmul.f32 %v1268, %v1153
      %v1270 = vmul.f32 %v1269, %v1268
      %v1271 = vmul.f32 0.5, %v1270
      %v1272 = vsub.f32 1.5, %v1271
      %v1273 = vmul.f32 %v1268, %v1272
      %vm1274 = vweird.f32 %v1153
      %vm1275 = vweird.f32 %v1268
      %vm1276 = vmor %vm1274, %vm1275
      %v1277 = vsel %vm1276, %v1268, %v1273
      %v1278 = vrsqrt.pop %v1154
      %v1279 = vmul.f32 %v1278, %v1154
      %v1280 = vmul.f32 %v1279, %v1278
      %v1281 = vmul.f32 0.5, %v1280
      %v1282 = vsub.f32 1.5, %v1281
      %v1283 = vmul.f32 %v1278, %v1282
      %vm1284 = vweird.f32 %v1154
      %vm1285 = vweird.f32 %v1278
      %vm1286 = vmor %vm1284, %vm1285
      %v1287 = vsel %vm1286, %v1278, %v1283
      %v1288 = vrsqrt.pop %v1155
      %v1289 = vmul.f32 %v1288, %v1155
      %v1290 = vmul.f32 %v1289, %v1288
      %v1291 = vmul.f32 0.5, %v1290
      %v1292 = vsub.f32 1.5, %v1291
      %v1293 = vmul.f32 %v1288, %v1292
      %vm1294 = vweird.f32 %v1155
      %vm1295 = vweird.f32 %v1288
      %vm1296 = vmor %vm1294, %vm1295
      %v1297 = vsel %vm1296, %v1288, %v1293
      %v1298 = vrsqrt.pop %v1156
      %v1299 = vmul.f32 %v1298, %v1156
      %v1300 = vmul.f32 %v1299, %v1298
      %v1301 = vmul.f32 0.5, %v1300
      %v1302 = vsub.f32 1.5, %v1301
      %v1303 = vmul.f32 %v1298, %v1302
      %vm1304 = vweird.f32 %v1156
      %vm1305 = vweird.f32 %v1298
      %vm1306 = vmor %vm1304, %vm1305
      %v1307 = vsel %vm1306, %v1298, %v1303
      %v1308 = vrsqrt.pop %v1157
      %v1309 = vmul.f32 %v1308, %v1157
      %v1310 = vmul.f32 %v1309, %v1308
      %v1311 = vmul.f32 0.5, %v1310
      %v1312 = vsub.f32 1.5, %v1311
      %v1313 = vmul.f32 %v1308, %v1312
      %vm1314 = vweird.f32 %v1157
      %vm1315 = vweird.f32 %v1308
      %vm1316 = vmor %vm1314, %vm1315
      %v1317 = vsel %vm1316, %v1308, %v1313
      %v1318 = vsub.f32 %v789, %v966
      %v1319 = vsub.f32 %v791, %v968
      %v1320 = vsub.f32 %v794, %v971
      %v1321 = vsub.f32 %v796, %v973
      %v1322 = vsub.f32 %v799, %v976
      %v1323 = vsub.f32 %v801, %v978
      %v1324 = vsub.f32 %v804, %v981
      %v1325 = vsub.f32 %v806, %v983
      %v1326 = vsub.f32 %v809, %v986
      %v1327 = vsub.f32 %v811, %v988
      %v1328 = vsub.f32 %v814, %v991
      %v1329 = vsub.f32 %v816, %v993
      %v1330 = vsub.f32 %v819, %v996
      %v1331 = vsub.f32 %v821, %v998
      %v1332 = vsub.f32 %v824, %v1001
      %v1333 = vsub.f32 %v826, %v1003
      %v1334 = vld [vmem:[%s2 + $0x1] sm:$0x1]
      %v1335 = vperm.slane %v1334, 0
      %v1336 = vmul.f32 %v1167, %v1335
      %v1337 = vmul.f32 %v1177, %v1335
      %v1338 = vmul.f32 %v1187, %v1335
      %v1339 = vmul.f32 %v1197, %v1335
      %v1340 = vmul.f32 %v1207, %v1335
      %v1341 = vmul.f32 %v1217, %v1335
      %v1342 = vmul.f32 %v1227, %v1335
      %v1343 = vmul.f32 %v1237, %v1335
      %v1344 = vmul.f32 %v1247, %v1335
      %v1345 = vmul.f32 %v1257, %v1335
      %v1346 = vmul.f32 %v1267, %v1335
      %v1347 = vmul.f32 %v1277, %v1335
      %v1348 = vmul.f32 %v1287, %v1335
      %v1349 = vmul.f32 %v1297, %v1335
      %v1350 = vmul.f32 %v1307, %v1335
      %v1351 = vmul.f32 %v1317, %v1335
      %v1352 = vmul.f32 %v1318, %v1336
      %v1353 = vmul.f32 %v1319, %v1337
      %v1354 = vmul.f32 %v1320, %v1338
      %v1355 = vmul.f32 %v1321, %v1339
      %v1356 = vmul.f32 %v1322, %v1340
      %v1357 = vmul.f32 %v1323, %v1341
      %v1358 = vmul.f32 %v1324, %v1342
      %v1359 = vmul.f32 %v1325, %v1343
      %v1360 = vmul.f32 %v1326, %v1344
      %v1361 = vmul.f32 %v1327, %v1345
      %v1362 = vmul.f32 %v1328, %v1346
      %v1363 = vmul.f32 %v1329, %v1347
      %v1364 = vmul.f32 %v1330, %v1348
      %v1365 = vmul.f32 %v1331, %v1349
      %v1366 = vmul.f32 %v1332, %v1350
      %v1367 = vmul.f32 %v1333, %v1351
      %v1368 = vld [vmem:[%s2 + $0x2] sm:$0x1]
      %v1369 = vperm.slane %v1368, 0
      %v1370 = vadd.f32 %v1352, %v1369
      %v1371 = vadd.f32 %v1353, %v1369
      %v1372 = vadd.f32 %v1354, %v1369
      %v1373 = vadd.f32 %v1355, %v1369
      %v1374 = vadd.f32 %v1356, %v1369
      %v1375 = vadd.f32 %v1357, %v1369
      %v1376 = vadd.f32 %v1358, %v1369
      %v1377 = vadd.f32 %v1359, %v1369
      %v1378 = vadd.f32 %v1360, %v1369
      %v1379 = vadd.f32 %v1361, %v1369
      %v1380 = vadd.f32 %v1362, %v1369
      %v1381 = vadd.f32 %v1363, %v1369
      %v1382 = vadd.f32 %v1364, %v1369
      %v1383 = vadd.f32 %v1365, %v1369
      %v1384 = vadd.f32 %v1366, %v1369
      %v1385 = vadd.f32 %v1367, %v1369
      %1386 = vst [vmem:[%s202] sm:$0xff] %v1370
      %1387 = vst [vmem:[%s202 + $0x8] sm:$0xff] %v1371
      %1388 = vst [vmem:[%s202 + $0x10] sm:$0xff] %v1372
      %1389 = vst [vmem:[%s202 + $0x18] sm:$0xff] %v1373
      %1390 = vst [vmem:[%s202 + $0x20] sm:$0xff] %v1374
      %1391 = vst [vmem:[%s202 + $0x28] sm:$0xff] %v1375
      %1392 = vst [vmem:[%s202 + $0x30] sm:$0xff] %v1376
      %1393 = vst [vmem:[%s202 + $0x38] sm:$0xff] %v1377
      %1394 = vst [vmem:[%s202 + $0x40] sm:$0xff] %v1378
      %1395 = vst [vmem:[%s202 + $0x48] sm:$0xff] %v1379
      %1396 = vst [vmem:[%s202 + $0x50] sm:$0xff] %v1380
      %1397 = vst [vmem:[%s202 + $0x58] sm:$0xff] %v1381
      %1398 = vst [vmem:[%s202 + $0x60] sm:$0xff] %v1382
      %1399 = vst [vmem:[%s202 + $0x68] sm:$0xff] %v1383
      %1400 = vst [vmem:[%s202 + $0x70] sm:$0xff] %v1384
      %1401 = vst [vmem:[%s202 + $0x78] sm:$0xff] %v1385
      %s1402 = smul.u32 16, %s15
      %p1403 = scmp.lt.s32.totalorder %s1402, 31
      %s1404 = scalar_select %p1403, %s1402, 31
      %s1405 = smul.addr %s1404, 8
      %s1406 = scalar_lea.vmem %s4, %s1405
      // Predicated region
      $region37: #{overlap_patch_embed.1} parent=35 // pred_check
        %p1407 = pneg %p122
      $region38: #{overlap_patch_embed.1} parent=35 // pred_check_branch
        %1409 = sbr.rel (%p1407) target = $region40
      $region39: #{overlap_patch_embed.1} parent=35 // pred_region
        %s1410 = smul.u32 16, %s15
      $region40: #{overlap_patch_embed.1} parent=35 // pred_fallthru
        _
    $region36: #{overlap_patch_embed.1} parent=5 // pred_fallthru
      _
    %p1411 = scmp.le.s32.totalorder 2, %s10
    // Predicated region
    $region41: #{overlap_patch_embed.1} parent=5 // pred_check
      %p1412 = pneg %p1411
    $region42: #{overlap_patch_embed.1} parent=5 // pred_check_branch
      %1414 = sbr.rel (%p1412) target = $region44
    $region43: #{overlap_patch_embed.1} parent=5 // pred_region
      %s1415 = ssub.s32 %s10, 2
      // Predicated region
      $region45: #{overlap_patch_embed.1} parent=43 // pred_check
        %p1416 = pneg %p128
      $region46: #{overlap_patch_embed.1} parent=43 // pred_check_branch
        %1418 = sbr.rel (%p1416) target = $region48
      $region47: #{overlap_patch_embed.1} parent=43 // pred_region
        %s1419 = smul.u32 16, %s16
        %p1420 = scmp.lt.s32.totalorder %s1419, 31
        %s1421 = scalar_select %p1420, %s1419, 31
        %s1422 = smul.addr %s1421, 8
        %s1423 = scalar_lea.vmem %s4, %s1422
      $region48: #{overlap_patch_embed.1} parent=43 // pred_fallthru
        _
    $region44: #{overlap_patch_embed.1} parent=5 // pred_fallthru
      _
  $region6: #{overlap_patch_embed.1} parent=0 // loop_footer
    %s14 = sadd.s32 1, %s10
  $region7: #{overlap_patch_embed.1} parent=0 // loop_footer_branch
    %9 = sbr.rel target = $region3
  $region8: #{overlap_patch_embed.1} parent=0 // loop_exit
    _

</llo_original>
